<compile_context>
chip_gen: v7x
topology: tpu7x:2x2x1
jax: 0.10.0
libtpu: 0.0.40
codegen_flags: <defaults>
</compile_context>

<pallas_src>
import functools

import jax
import jax.numpy as jnp
from jax.experimental import pallas as pl
from jax.experimental.pallas import tpu as pltpu


# --------------------------------- kernel -----------------------------------


def _multitask_head_kernel(h_ref, w1c_ref, b1c_ref, w2c_ref, b2c_ref,
                           temp_ref, labels_ref, out_ref,
                           pooled_acc, *, seq_len, s_tile, h2, mask_s_tail):
    s = pl.program_id(1)

    @pl.when(s == 0)
    def _init():
        pooled_acc[...] = jnp.zeros_like(pooled_acc)

    # Steady state: stream one [bt, st, H] tile in its native dtype, accumulate f32 sum.
    h = h_ref[...].astype(jnp.float32)
    if mask_s_tail:
        # cdiv grid over S: zero the out-of-range tail rows of the last S tile.
        row = s * s_tile + jax.lax.broadcasted_iota(jnp.int32, h.shape, 1)
        h = jnp.where(row < seq_len, h, 0.0)
    pooled_acc[...] += jnp.sum(h, axis=1)                       # [bt, H]

    # Epilogue: matmuls + temperature + per-sample cross-entropy, once per B tile.
    @pl.when(s == pl.num_programs(1) - 1)
    def _epilogue():
        pooled = pooled_acc[...] * (1.0 / seq_len)              # mean over the full S

        # Fused [W1 | w_reg]: one MXU pass feeds classifier hidden layer and regressor.
        xcat = (jnp.dot(pooled, w1c_ref[...].astype(jnp.float32),
                        preferred_element_type=jnp.float32)
                + b1c_ref[...].astype(jnp.float32))             # [bt, H2+1]

        colx = jax.lax.broadcasted_iota(jnp.int32, xcat.shape, 1)
        reg = jnp.sum(jnp.where(colx == h2, xcat, 0.0),
                      axis=-1, keepdims=True)                   # regressor column

        # 8-lane [W2 ; 0] => logits in cols 0-2, zeros in 3-7; no lane concat needed.
        hid = jnp.maximum(xcat, 0.0)
        logits8 = (jnp.dot(hid, w2c_ref[...].astype(jnp.float32),
                           preferred_element_type=jnp.float32)
                   + b2c_ref[...].astype(jnp.float32)) / temp_ref[0]

        col8 = jax.lax.broadcasted_iota(jnp.int32, logits8.shape, 1)
        valid = col8 < 3
        lm = jnp.where(valid, logits8, -jnp.inf)
        m = jnp.max(lm, axis=-1, keepdims=True)
        lse = m + jnp.log(jnp.sum(jnp.exp(lm - m), axis=-1, keepdims=True))
        picked = jnp.sum(jnp.where(labels_ref[...] == col8, logits8, 0.0),
                         axis=-1, keepdims=True)
        nll = lse - picked                                      # per-sample CE (mean in wrapper)

        # Packed output: cols 0-2 logits, col 3 regression_pred, col 4 nll, 5-7 zero.
        out_ref[...] = (logits8
                        + jnp.where(col8 == 3, reg, 0.0)
                        + jnp.where(col8 == 4, nll, 0.0))


# ------------------------------ tiling plan ----------------------------------


def _choose_b_tile(batch):
    """Tiny batches stay in one tile (padding/copying would inflate HBM traffic);
    otherwise a multiple-of-8 tile giving >= 2 tiles (v7x megacore), capped at 128."""
    if batch <= 8:
        return batch
    bt = (batch // 2) // 8 * 8
    return max(8, min(128, bt))


def _vmem_plan(bt, hidden, hc, w_itemsize):
    """Generation-aware VMEM budgets (v5e/v6e: 128 MiB physical; v7x: 64 MiB)."""
    def pad8(n): return -(-n // 8) * 8
    def pad128(n): return -(-n // 128) * 128
    try:
        cap = pltpu.get_tpu_info().vmem_capacity_bytes
    except Exception:                      # unknown chip / interpret mode
        cap = 64 << 20
    if cap >= (100 << 20):                 # v5e / v6e
        vmem_limit, stream_budget = 64 << 20, 24 << 20
    else:                                  # v7x-class (64 MiB physical)
        vmem_limit, stream_budget = 32 << 20, 10 << 20
    # Fixed (non-streamed) footprint: weights/biases/labels/output (conservatively
    # assume 2 buffers even though weights request Buffered(1)) + f32 accumulator.
    fixed = 2 * (pad8(hidden) * pad128(hc) * w_itemsize    # [W1 | w_reg]
                 + 8 * pad128(hc) * w_itemsize             # [b1 | b_reg]
                 + pad8(hc) * 128 * w_itemsize             # [W2 ; 0] (8 lanes -> 128 pad)
                 + 8 * 128 * w_itemsize                    # b2
                 + pad8(bt) * 128 * 4                      # labels (int32)
                 + pad8(bt) * 128 * 4)                     # packed f32 output
    fixed += pad8(bt) * pad128(hidden) * 4                 # pooled-sum scratch
    stream_budget = max(min(stream_budget, vmem_limit - fixed - (2 << 20)), 2 << 20)
    vmem_limit = min(max(vmem_limit, fixed + stream_budget + (4 << 20)), cap)
    return vmem_limit, stream_budget


def _choose_s_tile(bt, seq_len, hidden, itemsize, stream_budget):
    """Largest sublane-aligned S tile whose double-buffered input block fits the stream
    budget; a ragged tail is handled by the cdiv grid + in-kernel mask."""
    q = max(8, 32 // itemsize)             # (8,128) rule: 8 rows f32, 16 rows bf16
    max_rows = stream_budget // (2 * bt * hidden * itemsize)
    st = max(q, max_rows // q * q)
    return seq_len if st >= seq_len else st


# -------------------------------- wrapper ------------------------------------


def multitask_head(hidden_states, params, labels=None, *,
                   weight_dtype=None, b_tile=None, s_tile=None):
    """hidden_states: [B, S, H], streamed in its OWN dtype (emit bf16 upstream if HBM
    bandwidth matters -- no wrapper-side cast is done). labels: [B] int or None.
    Returns (loss, logits, regression_pred) like MultiTaskModel.forward."""
    B, S, H = hidden_states.shape
    H2 = params["w1"].shape[1]
    Hc = H2 + 1
    wdt = jnp.float32 if weight_dtype is None else weight_dtype

    # Parameter packing (tiny, once): fuse regressor into classifier matmul 1; give W2
    # 8 output lanes (3 logits + zeros) so the kernel emits one packed (bt, 8) store.
    w1c = jnp.concatenate([params["w1"], params["w_reg"]], axis=1).astype(wdt)
    b1c = jnp.concatenate([params["b1"], params["b_reg"]], axis=1).astype(wdt)
    w2c = jnp.zeros((Hc, 8), wdt).at[:H2, :3].set(params["w2"].astype(wdt))
    b2c = jnp.zeros((1, 8), wdt).at[:, :3].set(params["b2"].astype(wdt))
    temp = params["temperature"].reshape(1).astype(jnp.float32)
    labels2d = (jnp.zeros((B, 1), jnp.int32) if labels is None
                else labels.astype(jnp.int32).reshape(B, 1))

    itemsize = jnp.dtype(hidden_states.dtype).itemsize
    bt = _choose_b_tile(B) if b_tile is None else b_tile
    vmem_limit, stream_budget = _vmem_plan(bt, H, Hc, jnp.dtype(wdt).itemsize)
    st = (_choose_s_tile(bt, S, H, itemsize, stream_budget)
          if s_tile is None else min(s_tile, S))
    nb, ns = pl.cdiv(B, bt), pl.cdiv(S, st)
    mask_s_tail = (st < S) and (S % st != 0)

    kernel = functools.partial(_multitask_head_kernel, seq_len=S, s_tile=st, h2=H2,
                               mask_s_tail=mask_s_tail)

    def build(single_buffer_weights):
        # Single-buffer the constant-index weights (halves their VMEM on v7x).
        wkw = (dict(pipeline_mode=pl.Buffered(buffer_count=1))
               if single_buffer_weights else {})
        grid_spec = pltpu.PrefetchScalarGridSpec(
            num_scalar_prefetch=0,
            grid=(nb, ns),                                           # (B tiles, S tiles)
            in_specs=[
                pl.BlockSpec((bt, st, H), lambda b, s: (b, s, 0)),   # streamed hidden
                pl.BlockSpec((H, Hc), lambda b, s: (0, 0), **wkw),   # [W1 | w_reg]
                pl.BlockSpec((1, Hc), lambda b, s: (0, 0), **wkw),   # [b1 | b_reg]
                pl.BlockSpec((Hc, 8), lambda b, s: (0, 0), **wkw),   # [W2 ; 0] (8 lanes)
                pl.BlockSpec((1, 8), lambda b, s: (0, 0), **wkw),    # b2 (8 lanes)
                pl.BlockSpec(memory_space=pltpu.MemorySpace.SMEM),   # temperature
                pl.BlockSpec((bt, 1), lambda b, s: (b, 0)),          # labels
            ],
            out_specs=pl.BlockSpec((bt, 8), lambda b, s: (b, 0)),    # packed epilogue
            scratch_shapes=[pltpu.VMEM((bt, H), jnp.float32)],       # pooled-sum acc
        )
        return pl.pallas_call(
            kernel,
            out_shape=jax.ShapeDtypeStruct((B, 8), jnp.float32),
            grid_spec=grid_spec,
            compiler_params=pltpu.CompilerParams(
                dimension_semantics=("parallel", "arbitrary"),       # B across cores
                vmem_limit_bytes=vmem_limit,
            ),
        )

    try:
        packed = build(True)(hidden_states, w1c, b1c, w2c, b2c, temp, labels2d)
    except Exception:
        # Fallback if this jax version rejects single-buffered (Buffered(1)) operands.
        packed = build(False)(hidden_states, w1c, b1c, w2c, b2c, temp, labels2d)

    logits = packed[:, :3]
    regression_pred = packed[:, 3:4]
    loss = jnp.mean(packed[:, 4]) if labels is not None else None
    return loss, logits, regression_pred


# ------------------------- params / pure-JAX reference -----------------------


def init_params(key, hidden_size):
    """Deterministic init mimicking nn.Linear default (uniform +/- 1/sqrt(fan_in))."""
    H, H2 = hidden_size, hidden_size // 2
    ks = jax.random.split(key, 6)

    def lin(kw, kb, fan_in, fan_out):
        bound = 1.0 / jnp.sqrt(fan_in)
        w = jax.random.uniform(kw, (fan_in, fan_out), jnp.float32, -bound, bound)
        b = jax.random.uniform(kb, (1, fan_out), jnp.float32, -bound, bound)
        return w, b

    w_reg, b_reg = lin(ks[0], ks[1], H, 1)
    w1, b1 = lin(ks[2], ks[3], H, H2)
    w2, b2 = lin(ks[4], ks[5], H2, 3)
    return {"w_reg": w_reg, "b_reg": b_reg, "w1": w1, "b1": b1, "w2": w2, "b2": b2,
            "temperature": jnp.ones((1,), jnp.float32)}   # nn.Parameter(torch.ones(1))


def _reference(hidden_states, params, labels):
    """Pure-JAX reference of the module head (eval mode: dropouts are no-ops)."""
    pooled = hidden_states.astype(jnp.float32).mean(axis=1)
    reg = pooled @ params["w_reg"] + params["b_reg"]
    hid = jnp.maximum(pooled @ params["w1"] + params["b1"], 0.0)
    logits = (hid @ params["w2"] + params["b2"]) / params["temperature"][0]
    lse = jax.nn.logsumexp(logits, axis=-1)
    picked = jnp.take_along_axis(logits, labels[:, None], axis=-1)[:, 0]
    loss = jnp.mean(lse - picked)
    return loss, logits, reg


# ----------------------------------- demo ------------------------------------


if __name__ == "__main__":
    key = jax.random.PRNGKey(0)

    # ---- Test 1: exact f32 path at module-scale small shapes (B=2, S=8, H=32). ----
    B, S, H, VOCAB = 2, 8, 32, 50
    k_ids, k_emb, k_par, k_lab, key = jax.random.split(key, 5)
    input_ids = jax.random.randint(k_ids, (B, S), 0, VOCAB, dtype=jnp.int32)
    attention_mask = jnp.ones((B, S), jnp.int32)   # module mean-pools without the mask
    labels = jax.random.randint(k_lab, (B,), 0, 3, dtype=jnp.int32)
    # TODO(synk): full BERT encoder (`self.base`) not reimplemented; simulate its last
    # hidden states with a deterministic embedding lookup.
    emb = jax.random.normal(k_emb, (VOCAB, H), jnp.float32) * 0.02
    hidden_states = emb[input_ids]                 # [B, S, H], f32 straight from producer
    params = init_params(k_par, H)

    loss, logits, reg = multitask_head(hidden_states, params, labels)
    jax.block_until_ready((loss, logits, reg))
    rloss, rlogits, rreg = _reference(hidden_states, params, labels)
    assert jnp.allclose(logits, rlogits, atol=1e-5), "logits mismatch (f32)"
    assert jnp.allclose(reg, rreg, atol=1e-5), "regression mismatch (f32)"
    assert jnp.allclose(loss, rloss, atol=1e-5), "loss mismatch (f32)"

    # ---- Test 2: bf16 producer + real tiling (cdiv grids, S-tail mask, nb>=2). ----
    B2, S2, H2d, VOCAB2 = 20, 40, 128, 64
    k_ids2, k_emb2, k_par2, k_lab2, key = jax.random.split(key, 5)
    ids2 = jax.random.randint(k_ids2, (B2, S2), 0, VOCAB2, dtype=jnp.int32)
    labels2 = jax.random.randint(k_lab2, (B2,), 0, 3, dtype=jnp.int32)
    emb2 = (jax.random.normal(k_emb2, (VOCAB2, H2d), jnp.float32) * 0.02).astype(jnp.bfloat16)
    hidden2 = emb2[ids2]                           # bf16 emitted by the producer (no cast)
    params2 = init_params(k_par2, H2d)

    loss2, logits2, reg2 = multitask_head(hidden2, params2, labels2, s_tile=16)
    jax.block_until_ready((loss2, logits2, reg2))
    rloss2, rlogits2, rreg2 = _reference(hidden2.astype(jnp.float32), params2, labels2)
    assert jnp.allclose(logits2, rlogits2, atol=1e-4), "logits mismatch (bf16 stream)"
    assert jnp.allclose(reg2, rreg2, atol=1e-4), "regression mismatch (bf16 stream)"
    assert jnp.allclose(loss2, rloss2, atol=1e-4), "loss mismatch (bf16 stream)"

    print("KERNEL_OK")
</pallas_src>

<mosaic_0001>
module attributes {stable_mosaic.version = 11 : i64} {
  func.func @_multitask_head_kernel(%arg0: i32, %arg1: i32, %arg2: memref<2x8x32xf32, #tpu.memory_space<vmem>>, %arg3: memref<32x17xf32, #tpu.memory_space<vmem>>, %arg4: memref<1x17xf32, #tpu.memory_space<vmem>>, %arg5: memref<17x8xf32, #tpu.memory_space<vmem>>, %arg6: memref<1x8xf32, #tpu.memory_space<vmem>>, %arg7: memref<1xf32, #tpu.memory_space<smem>>, %arg8: memref<2x1xi32, #tpu.memory_space<vmem>>, %arg9: memref<2x8xf32, #tpu.memory_space<vmem>>, %arg10: memref<2x32xf32, #tpu.memory_space<vmem>>) attributes {dimension_semantics = [#tpu.dimension_semantics<parallel>, #tpu.dimension_semantics<arbitrary>], iteration_bounds = array<i64: 1, 1>, scalar_prefetch = 0 : i64, scratch_operands = 1 : i64, tpu.core_type = #tpu.core_type<tc>, window_params = [{transform_indices = @transform_0, window_bounds = array<i64: 2, 8, 32>}, {pipeline_mode = #tpu.pipeline_mode<synchronous>, transform_indices = @transform_1, window_bounds = array<i64: 32, 17>}, {pipeline_mode = #tpu.pipeline_mode<synchronous>, transform_indices = @transform_2, window_bounds = array<i64: 1, 17>}, {pipeline_mode = #tpu.pipeline_mode<synchronous>, transform_indices = @transform_3, window_bounds = array<i64: 17, 8>}, {pipeline_mode = #tpu.pipeline_mode<synchronous>, transform_indices = @transform_4, window_bounds = array<i64: 1, 8>}, {transform_indices = @transform_5, window_bounds = array<i64: 1>}, {transform_indices = @transform_6, window_bounds = array<i64: 2, 1>}, {transform_indices = @transform_7, window_bounds = array<i64: 2, 8>}]} {
    %c0_i32 = arith.constant 0 : i32
    %0 = arith.cmpi eq, %arg1, %c0_i32 : i32
    %1 = arith.extui %0 : i1 to i32
    %c0_i32_0 = arith.constant 0 : i32
    %2 = arith.cmpi ne, %1, %c0_i32_0 : i32
    scf.if %2 {
      %cst_9 = arith.constant 0.000000e+00 : f32
      %11 = vector.broadcast %cst_9 : f32 to vector<2x32xf32>
      %c0_10 = arith.constant 0 : index
      %c0_11 = arith.constant 0 : index
      %12 = vector.load %arg10[%c0_10, %c0_11] : memref<2x32xf32, #tpu.memory_space<vmem>>, vector<2x32xf32>
      tpu.vector_store %arg10[%c0_10, %c0_11], %11 {strides = array<i32>} : memref<2x32xf32, #tpu.memory_space<vmem>>, vector<2x32xf32>,
    } else {
    }
    %c0 = arith.constant 0 : index
    %c0_1 = arith.constant 0 : index
    %c0_2 = arith.constant 0 : index
    %3 = vector.load %arg2[%c0, %c0_1, %c0_2] : memref<2x8x32xf32, #tpu.memory_space<vmem>>, vector<2x8x32xf32>
    %c0_3 = arith.constant 0 : index
    %c0_4 = arith.constant 0 : index
    %4 = vector.load %arg10[%c0_3, %c0_4] : memref<2x32xf32, #tpu.memory_space<vmem>>, vector<2x32xf32>
    %cst = arith.constant dense<0.000000e+00> : vector<2x32xf32>
    %5 = vector.multi_reduction <add>, %3, %cst [1] : vector<2x8x32xf32> to vector<2x32xf32>
    %6 = arith.addf %4, %5 : vector<2x32xf32>
    %c0_5 = arith.constant 0 : index
    %c0_6 = arith.constant 0 : index
    %7 = vector.load %arg10[%c0_5, %c0_6] : memref<2x32xf32, #tpu.memory_space<vmem>>, vector<2x32xf32>
    tpu.vector_store %arg10[%c0_5, %c0_6], %6 {strides = array<i32>} : memref<2x32xf32, #tpu.memory_space<vmem>>, vector<2x32xf32>,
    %c0_i32_7 = arith.constant 0 : i32
    %8 = arith.cmpi eq, %arg1, %c0_i32_7 : i32
    %9 = arith.extui %8 : i1 to i32
    %c0_i32_8 = arith.constant 0 : i32
    %10 = arith.cmpi ne, %9, %c0_i32_8 : i32
    scf.if %10 {
      %c0_9 = arith.constant 0 : index
      %c0_10 = arith.constant 0 : index
      %11 = vector.load %arg10[%c0_9, %c0_10] : memref<2x32xf32, #tpu.memory_space<vmem>>, vector<2x32xf32>
      %cst_11 = arith.constant 1.250000e-01 : f32
      %12 = vector.broadcast %cst_11 : f32 to vector<2x32xf32>
      %13 = arith.mulf %11, %12 : vector<2x32xf32>
      %c0_12 = arith.constant 0 : index
      %c0_13 = arith.constant 0 : index
      %14 = vector.load %arg3[%c0_12, %c0_13] : memref<32x17xf32, #tpu.memory_space<vmem>>, vector<32x17xf32>
      %cst_14 = arith.constant dense<0.000000e+00> : vector<2x17xf32>
      %15 = tpu.matmul %13, %14, %cst_14 {dimension_numbers = #tpu.dot_dimension_numbers<[1], [0], [0], [1], [0, 0, 1, 1], [], []>} : vector<2x32xf32>, vector<32x17xf32>, vector<2x17xf32> -> vector<2x17xf32>
      %c0_15 = arith.constant 0 : index
      %c0_16 = arith.constant 0 : index
      %16 = vector.load %arg4[%c0_15, %c0_16] : memref<1x17xf32, #tpu.memory_space<vmem>>, vector<1x17xf32>
      %17 = vector.broadcast %16 : vector<1x17xf32> to vector<2x17xf32>
      %18 = arith.addf %15, %17 : vector<2x17xf32>
      %19 = tpu.iota {dimensions = array<i32: 1>} : vector<2x17xi32>
      %c16_i32 = arith.constant 16 : i32
      %20 = vector.broadcast %c16_i32 : i32 to vector<2x17xi32>
      %21 = arith.cmpi eq, %19, %20 : vector<2x17xi32>
      %cst_17 = arith.constant 0.000000e+00 : f32
      %22 = vector.broadcast %cst_17 : f32 to vector<2x17xf32>
      %23 = arith.select %21, %18, %22 : vector<2x17xi1>, vector<2x17xf32>
      %cst_18 = arith.constant dense<0.000000e+00> : vector<2xf32>
      %24 = vector.multi_reduction <add>, %23, %cst_18 [1] : vector<2x17xf32> to vector<2xf32>
      %25 = vector.shape_cast %24 : vector<2xf32> to vector<2x1xf32>
      %cst_19 = arith.constant 0.000000e+00 : f32
      %26 = vector.broadcast %cst_19 : f32 to vector<2x17xf32>
      %27 = arith.maximumf %18, %26 : vector<2x17xf32>
      %c0_20 = arith.constant 0 : index
      %c0_21 = arith.constant 0 : index
      %28 = vector.load %arg5[%c0_20, %c0_21] : memref<17x8xf32, #tpu.memory_space<vmem>>, vector<17x8xf32>
      %cst_22 = arith.constant dense<0.000000e+00> : vector<2x8xf32>
      %29 = tpu.matmul %27, %28, %cst_22 {dimension_numbers = #tpu.dot_dimension_numbers<[1], [0], [0], [1], [0, 0, 1, 1], [], []>} : vector<2x17xf32>, vector<17x8xf32>, vector<2x8xf32> -> vector<2x8xf32>
      %c0_23 = arith.constant 0 : index
      %c0_24 = arith.constant 0 : index
      %30 = vector.load %arg6[%c0_23, %c0_24] : memref<1x8xf32, #tpu.memory_space<vmem>>, vector<1x8xf32>
      %31 = vector.broadcast %30 : vector<1x8xf32> to vector<2x8xf32>
      %32 = arith.addf %29, %31 : vector<2x8xf32>
      %c0_25 = arith.constant 0 : index
      %33 = memref.load %arg7[%c0_25] : memref<1xf32, #tpu.memory_space<smem>>
      %34 = vector.broadcast %33 : f32 to vector<2x8xf32>
      %35 = arith.divf %32, %34 : vector<2x8xf32>
      %36 = tpu.iota {dimensions = array<i32: 1>} : vector<2x8xi32>
      %c3_i32 = arith.constant 3 : i32
      %37 = vector.broadcast %c3_i32 : i32 to vector<2x8xi32>
      %38 = arith.cmpi slt, %36, %37 : vector<2x8xi32>
      %cst_26 = arith.constant 0xFF800000 : f32
      %39 = vector.broadcast %cst_26 : f32 to vector<2x8xf32>
      %40 = arith.select %38, %35, %39 : vector<2x8xi1>, vector<2x8xf32>
      %cst_27 = arith.constant dense<0xFF800000> : vector<2xf32>
      %41 = vector.multi_reduction <maximumf>, %40, %cst_27 [1] : vector<2x8xf32> to vector<2xf32>
      %42 = vector.shape_cast %41 : vector<2xf32> to vector<2x1xf32>
      %43 = vector.broadcast %42 : vector<2x1xf32> to vector<2x8xf32>
      %44 = arith.subf %40, %43 : vector<2x8xf32>
      %45 = math.exp %44 : vector<2x8xf32>
      %cst_28 = arith.constant dense<0.000000e+00> : vector<2xf32>
      %46 = vector.multi_reduction <add>, %45, %cst_28 [1] : vector<2x8xf32> to vector<2xf32>
      %47 = vector.shape_cast %46 : vector<2xf32> to vector<2x1xf32>
      %48 = math.log %47 : vector<2x1xf32>
      %49 = arith.addf %42, %48 : vector<2x1xf32>
      %c0_29 = arith.constant 0 : index
      %c0_30 = arith.constant 0 : index
      %50 = vector.load %arg8[%c0_29, %c0_30] : memref<2x1xi32, #tpu.memory_space<vmem>>, vector<2x1xi32>
      %51 = vector.broadcast %50 : vector<2x1xi32> to vector<2x8xi32>
      %52 = arith.cmpi eq, %51, %36 : vector<2x8xi32>
      %cst_31 = arith.constant 0.000000e+00 : f32
      %53 = vector.broadcast %cst_31 : f32 to vector<2x8xf32>
      %54 = arith.select %52, %35, %53 : vector<2x8xi1>, vector<2x8xf32>
      %cst_32 = arith.constant dense<0.000000e+00> : vector<2xf32>
      %55 = vector.multi_reduction <add>, %54, %cst_32 [1] : vector<2x8xf32> to vector<2xf32>
      %56 = vector.shape_cast %55 : vector<2xf32> to vector<2x1xf32>
      %57 = arith.subf %49, %56 : vector<2x1xf32>
      %c3_i32_33 = arith.constant 3 : i32
      %58 = vector.broadcast %c3_i32_33 : i32 to vector<2x8xi32>
      %59 = arith.cmpi eq, %36, %58 : vector<2x8xi32>
      %cst_34 = arith.constant 0.000000e+00 : f32
      %60 = vector.shape_cast %25 : vector<2x1xf32> to vector<2x1xf32>
      %61 = vector.broadcast %60 : vector<2x1xf32> to vector<2x8xf32>
      %62 = vector.broadcast %cst_34 : f32 to vector<2x8xf32>
      %63 = arith.select %59, %61, %62 : vector<2x8xi1>, vector<2x8xf32>
      %64 = arith.addf %35, %63 : vector<2x8xf32>
      %c4_i32 = arith.constant 4 : i32
      %65 = vector.broadcast %c4_i32 : i32 to vector<2x8xi32>
      %66 = arith.cmpi eq, %36, %65 : vector<2x8xi32>
      %cst_35 = arith.constant 0.000000e+00 : f32
      %67 = vector.shape_cast %57 : vector<2x1xf32> to vector<2x1xf32>
      %68 = vector.broadcast %67 : vector<2x1xf32> to vector<2x8xf32>
      %69 = vector.broadcast %cst_35 : f32 to vector<2x8xf32>
      %70 = arith.select %66, %68, %69 : vector<2x8xi1>, vector<2x8xf32>
      %71 = arith.addf %64, %70 : vector<2x8xf32>
      %c0_36 = arith.constant 0 : index
      %c0_37 = arith.constant 0 : index
      %72 = vector.load %arg9[%c0_36, %c0_37] : memref<2x8xf32, #tpu.memory_space<vmem>>, vector<2x8xf32>
      tpu.vector_store %arg9[%c0_36, %c0_37], %71 {strides = array<i32>} : memref<2x8xf32, #tpu.memory_space<vmem>>, vector<2x8xf32>,
    } else {
    }
    return
  }
  func.func @transform_0(%arg0: i32, %arg1: i32) -> (i32, i32, i32) {
    %c0_i32 = arith.constant 0 : i32
    %c0_i32_0 = arith.constant 0 : i32
    return %arg0, %arg1, %c0_i32 : i32, i32, i32
  }
  func.func @transform_1(%arg0: i32, %arg1: i32) -> (i32, i32) {
    %c0_i32 = arith.constant 0 : i32
    %c0_i32_0 = arith.constant 0 : i32
    %c0_i32_1 = arith.constant 0 : i32
    return %c0_i32, %c0_i32_0 : i32, i32
  }
  func.func @transform_2(%arg0: i32, %arg1: i32) -> (i32, i32) {
    %c0_i32 = arith.constant 0 : i32
    %c0_i32_0 = arith.constant 0 : i32
    %c0_i32_1 = arith.constant 0 : i32
    return %c0_i32, %c0_i32_0 : i32, i32
  }
  func.func @transform_3(%arg0: i32, %arg1: i32) -> (i32, i32) {
    %c0_i32 = arith.constant 0 : i32
    %c0_i32_0 = arith.constant 0 : i32
    %c0_i32_1 = arith.constant 0 : i32
    return %c0_i32, %c0_i32_0 : i32, i32
  }
  func.func @transform_4(%arg0: i32, %arg1: i32) -> (i32, i32) {
    %c0_i32 = arith.constant 0 : i32
    %c0_i32_0 = arith.constant 0 : i32
    %c0_i32_1 = arith.constant 0 : i32
    return %c0_i32, %c0_i32_0 : i32, i32
  }
  func.func @transform_5(%arg0: i32, %arg1: i32) -> i32 {
    %c0_i32 = arith.constant 0 : i32
    %c0_i32_0 = arith.constant 0 : i32
    return %c0_i32 : i32
  }
  func.func @transform_6(%arg0: i32, %arg1: i32) -> (i32, i32) {
    %c0_i32 = arith.constant 0 : i32
    %c0_i32_0 = arith.constant 0 : i32
    return %arg0, %c0_i32 : i32, i32
  }
  func.func @transform_7(%arg0: i32, %arg1: i32) -> (i32, i32) {
    %c0_i32 = arith.constant 0 : i32
    %c0_i32_0 = arith.constant 0 : i32
    return %arg0, %c0_i32 : i32, i32
  }
}

module attributes {stable_mosaic.version = 11 : i64} {
  func.func @_multitask_head_kernel(%arg0: i32, %arg1: i32, %arg2: memref<2x8x32xf32, #tpu.memory_space<vmem>>, %arg3: memref<32x17xf32, #tpu.memory_space<vmem>>, %arg4: memref<1x17xf32, #tpu.memory_space<vmem>>, %arg5: memref<17x8xf32, #tpu.memory_space<vmem>>, %arg6: memref<1x8xf32, #tpu.memory_space<vmem>>, %arg7: memref<1xf32, #tpu.memory_space<smem>>, %arg8: memref<2x1xi32, #tpu.memory_space<vmem>>, %arg9: memref<2x8xf32, #tpu.memory_space<vmem>>, %arg10: memref<2x32xf32, #tpu.memory_space<vmem>>) attributes {dimension_semantics = [#tpu.dimension_semantics<parallel>, #tpu.dimension_semantics<arbitrary>], iteration_bounds = array<i64: 1, 1>, scalar_prefetch = 0 : i64, scratch_operands = 1 : i64, tpu.core_type = #tpu.core_type<tc>, window_params = [{transform_indices = @transform_0, window_bounds = array<i64: 2, 8, 32>}, {pipeline_mode = #tpu.pipeline_mode<synchronous>, transform_indices = @transform_1, window_bounds = array<i64: 32, 17>}, {pipeline_mode = #tpu.pipeline_mode<synchronous>, transform_indices = @transform_2, window_bounds = array<i64: 1, 17>}, {pipeline_mode = #tpu.pipeline_mode<synchronous>, transform_indices = @transform_3, window_bounds = array<i64: 17, 8>}, {pipeline_mode = #tpu.pipeline_mode<synchronous>, transform_indices = @transform_4, window_bounds = array<i64: 1, 8>}, {transform_indices = @transform_5, window_bounds = array<i64: 1>}, {transform_indices = @transform_6, window_bounds = array<i64: 2, 1>}, {transform_indices = @transform_7, window_bounds = array<i64: 2, 8>}]} {
    %c0_i32 = arith.constant 0 : i32
    %0 = arith.cmpi eq, %arg1, %c0_i32 : i32
    %1 = arith.extui %0 : i1 to i32
    %c0_i32_0 = arith.constant 0 : i32
    %2 = arith.cmpi ne, %1, %c0_i32_0 : i32
    scf.if %2 {
      %cst_9 = arith.constant 0.000000e+00 : f32
      %11 = vector.broadcast %cst_9 : f32 to vector<2x32xf32>
      %c0_10 = arith.constant 0 : index
      %c0_11 = arith.constant 0 : index
      %12 = vector.load %arg10[%c0_10, %c0_11] : memref<2x32xf32, #tpu.memory_space<vmem>>, vector<2x32xf32>
      tpu.vector_store %arg10[%c0_10, %c0_11], %11 {strides = array<i32>} : memref<2x32xf32, #tpu.memory_space<vmem>>, vector<2x32xf32>,
    } else {
    }
    %c0 = arith.constant 0 : index
    %c0_1 = arith.constant 0 : index
    %c0_2 = arith.constant 0 : index
    %3 = vector.load %arg2[%c0, %c0_1, %c0_2] : memref<2x8x32xf32, #tpu.memory_space<vmem>>, vector<2x8x32xf32>
    %c0_3 = arith.constant 0 : index
    %c0_4 = arith.constant 0 : index
    %4 = vector.load %arg10[%c0_3, %c0_4] : memref<2x32xf32, #tpu.memory_space<vmem>>, vector<2x32xf32>
    %cst = arith.constant dense<0.000000e+00> : vector<2x32xf32>
    %5 = vector.multi_reduction <add>, %3, %cst [1] : vector<2x8x32xf32> to vector<2x32xf32>
    %6 = arith.addf %4, %5 : vector<2x32xf32>
    %c0_5 = arith.constant 0 : index
    %c0_6 = arith.constant 0 : index
    %7 = vector.load %arg10[%c0_5, %c0_6] : memref<2x32xf32, #tpu.memory_space<vmem>>, vector<2x32xf32>
    tpu.vector_store %arg10[%c0_5, %c0_6], %6 {strides = array<i32>} : memref<2x32xf32, #tpu.memory_space<vmem>>, vector<2x32xf32>,
    %c0_i32_7 = arith.constant 0 : i32
    %8 = arith.cmpi eq, %arg1, %c0_i32_7 : i32
    %9 = arith.extui %8 : i1 to i32
    %c0_i32_8 = arith.constant 0 : i32
    %10 = arith.cmpi ne, %9, %c0_i32_8 : i32
    scf.if %10 {
      %c0_9 = arith.constant 0 : index
      %c0_10 = arith.constant 0 : index
      %11 = vector.load %arg10[%c0_9, %c0_10] : memref<2x32xf32, #tpu.memory_space<vmem>>, vector<2x32xf32>
      %cst_11 = arith.constant 1.250000e-01 : f32
      %12 = vector.broadcast %cst_11 : f32 to vector<2x32xf32>
      %13 = arith.mulf %11, %12 : vector<2x32xf32>
      %c0_12 = arith.constant 0 : index
      %c0_13 = arith.constant 0 : index
      %14 = vector.load %arg3[%c0_12, %c0_13] : memref<32x17xf32, #tpu.memory_space<vmem>>, vector<32x17xf32>
      %cst_14 = arith.constant dense<0.000000e+00> : vector<2x17xf32>
      %15 = tpu.matmul %13, %14, %cst_14 {dimension_numbers = #tpu.dot_dimension_numbers<[1], [0], [0], [1], [0, 0, 1, 1], [], []>} : vector<2x32xf32>, vector<32x17xf32>, vector<2x17xf32> -> vector<2x17xf32>
      %c0_15 = arith.constant 0 : index
      %c0_16 = arith.constant 0 : index
      %16 = vector.load %arg4[%c0_15, %c0_16] : memref<1x17xf32, #tpu.memory_space<vmem>>, vector<1x17xf32>
      %17 = vector.broadcast %16 : vector<1x17xf32> to vector<2x17xf32>
      %18 = arith.addf %15, %17 : vector<2x17xf32>
      %19 = tpu.iota {dimensions = array<i32: 1>} : vector<2x17xi32>
      %c16_i32 = arith.constant 16 : i32
      %20 = vector.broadcast %c16_i32 : i32 to vector<2x17xi32>
      %21 = arith.cmpi eq, %19, %20 : vector<2x17xi32>
      %cst_17 = arith.constant 0.000000e+00 : f32
      %22 = vector.broadcast %cst_17 : f32 to vector<2x17xf32>
      %23 = arith.select %21, %18, %22 : vector<2x17xi1>, vector<2x17xf32>
      %cst_18 = arith.constant dense<0.000000e+00> : vector<2xf32>
      %24 = vector.multi_reduction <add>, %23, %cst_18 [1] : vector<2x17xf32> to vector<2xf32>
      %25 = vector.shape_cast %24 : vector<2xf32> to vector<2x1xf32>
      %cst_19 = arith.constant 0.000000e+00 : f32
      %26 = vector.broadcast %cst_19 : f32 to vector<2x17xf32>
      %27 = arith.maximumf %18, %26 : vector<2x17xf32>
      %c0_20 = arith.constant 0 : index
      %c0_21 = arith.constant 0 : index
      %28 = vector.load %arg5[%c0_20, %c0_21] : memref<17x8xf32, #tpu.memory_space<vmem>>, vector<17x8xf32>
      %cst_22 = arith.constant dense<0.000000e+00> : vector<2x8xf32>
      %29 = tpu.matmul %27, %28, %cst_22 {dimension_numbers = #tpu.dot_dimension_numbers<[1], [0], [0], [1], [0, 0, 1, 1], [], []>} : vector<2x17xf32>, vector<17x8xf32>, vector<2x8xf32> -> vector<2x8xf32>
      %c0_23 = arith.constant 0 : index
      %c0_24 = arith.constant 0 : index
      %30 = vector.load %arg6[%c0_23, %c0_24] : memref<1x8xf32, #tpu.memory_space<vmem>>, vector<1x8xf32>
      %31 = vector.broadcast %30 : vector<1x8xf32> to vector<2x8xf32>
      %32 = arith.addf %29, %31 : vector<2x8xf32>
      %c0_25 = arith.constant 0 : index
      %33 = memref.load %arg7[%c0_25] : memref<1xf32, #tpu.memory_space<smem>>
      %34 = vector.broadcast %33 : f32 to vector<2x8xf32>
      %35 = arith.divf %32, %34 : vector<2x8xf32>
      %36 = tpu.iota {dimensions = array<i32: 1>} : vector<2x8xi32>
      %c3_i32 = arith.constant 3 : i32
      %37 = vector.broadcast %c3_i32 : i32 to vector<2x8xi32>
      %38 = arith.cmpi slt, %36, %37 : vector<2x8xi32>
      %cst_26 = arith.constant 0xFF800000 : f32
      %39 = vector.broadcast %cst_26 : f32 to vector<2x8xf32>
      %40 = arith.select %38, %35, %39 : vector<2x8xi1>, vector<2x8xf32>
      %cst_27 = arith.constant dense<0xFF800000> : vector<2xf32>
      %41 = vector.multi_reduction <maximumf>, %40, %cst_27 [1] : vector<2x8xf32> to vector<2xf32>
      %42 = vector.shape_cast %41 : vector<2xf32> to vector<2x1xf32>
      %43 = vector.broadcast %42 : vector<2x1xf32> to vector<2x8xf32>
      %44 = arith.subf %40, %43 : vector<2x8xf32>
      %45 = math.exp %44 : vector<2x8xf32>
      %cst_28 = arith.constant dense<0.000000e+00> : vector<2xf32>
      %46 = vector.multi_reduction <add>, %45, %cst_28 [1] : vector<2x8xf32> to vector<2xf32>
      %47 = vector.shape_cast %46 : vector<2xf32> to vector<2x1xf32>
      %48 = math.log %47 : vector<2x1xf32>
      %49 = arith.addf %42, %48 : vector<2x1xf32>
      %c0_29 = arith.constant 0 : index
      %c0_30 = arith.constant 0 : index
      %50 = vector.load %arg8[%c0_29, %c0_30] : memref<2x1xi32, #tpu.memory_space<vmem>>, vector<2x1xi32>
      %51 = vector.broadcast %50 : vector<2x1xi32> to vector<2x8xi32>
      %52 = arith.cmpi eq, %51, %36 : vector<2x8xi32>
      %cst_31 = arith.constant 0.000000e+00 : f32
      %53 = vector.broadcast %cst_31 : f32 to vector<2x8xf32>
      %54 = arith.select %52, %35, %53 : vector<2x8xi1>, vector<2x8xf32>
      %cst_32 = arith.constant dense<0.000000e+00> : vector<2xf32>
      %55 = vector.multi_reduction <add>, %54, %cst_32 [1] : vector<2x8xf32> to vector<2xf32>
      %56 = vector.shape_cast %55 : vector<2xf32> to vector<2x1xf32>
      %57 = arith.subf %49, %56 : vector<2x1xf32>
      %c3_i32_33 = arith.constant 3 : i32
      %58 = vector.broadcast %c3_i32_33 : i32 to vector<2x8xi32>
      %59 = arith.cmpi eq, %36, %58 : vector<2x8xi32>
      %cst_34 = arith.constant 0.000000e+00 : f32
      %60 = vector.shape_cast %25 : vector<2x1xf32> to vector<2x1xf32>
      %61 = vector.broadcast %60 : vector<2x1xf32> to vector<2x8xf32>
      %62 = vector.broadcast %cst_34 : f32 to vector<2x8xf32>
      %63 = arith.select %59, %61, %62 : vector<2x8xi1>, vector<2x8xf32>
      %64 = arith.addf %35, %63 : vector<2x8xf32>
      %c4_i32 = arith.constant 4 : i32
      %65 = vector.broadcast %c4_i32 : i32 to vector<2x8xi32>
      %66 = arith.cmpi eq, %36, %65 : vector<2x8xi32>
      %cst_35 = arith.constant 0.000000e+00 : f32
      %67 = vector.shape_cast %57 : vector<2x1xf32> to vector<2x1xf32>
      %68 = vector.broadcast %67 : vector<2x1xf32> to vector<2x8xf32>
      %69 = vector.broadcast %cst_35 : f32 to vector<2x8xf32>
      %70 = arith.select %66, %68, %69 : vector<2x8xi1>, vector<2x8xf32>
      %71 = arith.addf %64, %70 : vector<2x8xf32>
      %c0_36 = arith.constant 0 : index
      %c0_37 = arith.constant 0 : index
      %72 = vector.load %arg9[%c0_36, %c0_37] : memref<2x8xf32, #tpu.memory_space<vmem>>, vector<2x8xf32>
      tpu.vector_store %arg9[%c0_36, %c0_37], %71 {strides = array<i32>} : memref<2x8xf32, #tpu.memory_space<vmem>>, vector<2x8xf32>,
    } else {
    }
    return
  }
  func.func @transform_0(%arg0: i32, %arg1: i32) -> (i32, i32, i32) {
    %c0_i32 = arith.constant 0 : i32
    %c0_i32_0 = arith.constant 0 : i32
    return %arg0, %arg1, %c0_i32 : i32, i32, i32
  }
  func.func @transform_1(%arg0: i32, %arg1: i32) -> (i32, i32) {
    %c0_i32 = arith.constant 0 : i32
    %c0_i32_0 = arith.constant 0 : i32
    %c0_i32_1 = arith.constant 0 : i32
    return %c0_i32, %c0_i32_0 : i32, i32
  }
  func.func @transform_2(%arg0: i32, %arg1: i32) -> (i32, i32) {
    %c0_i32 = arith.constant 0 : i32
    %c0_i32_0 = arith.constant 0 : i32
    %c0_i32_1 = arith.constant 0 : i32
    return %c0_i32, %c0_i32_0 : i32, i32
  }
  func.func @transform_3(%arg0: i32, %arg1: i32) -> (i32, i32) {
    %c0_i32 = arith.constant 0 : i32
    %c0_i32_0 = arith.constant 0 : i32
    %c0_i32_1 = arith.constant 0 : i32
    return %c0_i32, %c0_i32_0 : i32, i32
  }
  func.func @transform_4(%arg0: i32, %arg1: i32) -> (i32, i32) {
    %c0_i32 = arith.constant 0 : i32
    %c0_i32_0 = arith.constant 0 : i32
    %c0_i32_1 = arith.constant 0 : i32
    return %c0_i32, %c0_i32_0 : i32, i32
  }
  func.func @transform_5(%arg0: i32, %arg1: i32) -> i32 {
    %c0_i32 = arith.constant 0 : i32
    %c0_i32_0 = arith.constant 0 : i32
    return %c0_i32 : i32
  }
  func.func @transform_6(%arg0: i32, %arg1: i32) -> (i32, i32) {
    %c0_i32 = arith.constant 0 : i32
    %c0_i32_0 = arith.constant 0 : i32
    return %arg0, %c0_i32 : i32, i32
  }
  func.func @transform_7(%arg0: i32, %arg1: i32) -> (i32, i32) {
    %c0_i32 = arith.constant 0 : i32
    %c0_i32_0 = arith.constant 0 : i32
    return %arg0, %c0_i32 : i32, i32
  }
}

</mosaic_0001>

<llo_original>
// kernel: tpu_custom_call.1
$region0: #{tpu_custom_call.1}
  #allocation0 [shape = 'u32[]', space=smem, size = 0x4, offset = 0x4, fixed_abs, tag = 'smem constant byte address 0x4 - core index']
  #allocation1 [shape = 'u32[144,128]{1,0:T(1,128)}', space=vmem, size = 0x12000, scoped, tag = 'internal scratch']
  #allocation2 [shape = 'f32[2,32]{1,0:T(2,128)}', space=vmem, size = 0x400, scoped, tag = 'scratch operand']
  #allocation3 [shape = 'f32[1]{0:T(128)S(6)}', space=smem, size = 0x200, scoped, tag = 'scoped memory for tpu_custom_call.1']
  %s0 = inlined_call_operand.vmem [shape: f32[2,8,32], index: 0, kind: input, shape index: {}]
  %s1 = inlined_call_operand.vmem [shape: f32[32,17], index: 1, kind: input, shape index: {}]
  %s2 = inlined_call_operand.vmem [shape: f32[1,17], index: 2, kind: input, shape index: {}]
  %s3 = inlined_call_operand.vmem [shape: f32[17,8], index: 3, kind: input, shape index: {}]
  %s4 = inlined_call_operand.vmem [shape: f32[1,8], index: 4, kind: input, shape index: {}]
  %s5 = inlined_call_operand.<no memory space> [shape: f32[1], index: 5, kind: input, shape index: {}]
  %s6 = inlined_call_operand.vmem [shape: s32[2,1], index: 6, kind: input, shape index: {}]
  %s7 = inlined_call_operand.hbm [shape: f32[2,8], index: 7, kind: output, shape index: {}]
  %s8 = sld [smem:[#allocation0]]
  $region46: #{tpu_custom_call.1} parent=0
    _
  %s10 = ssub.s32 1, %s8
  %s11 = scalar_select 0, %s10, %s8
  %12 = sst [smem:[#allocation3]] %s5
  $region1: #{tpu_custom_call.1} parent=0
    #allocation4 [shape = 'u8[1024]{0}', space=vmem, size = 0x400, scoped, tag = 'output window, operand 0, single buffered']
    #allocation5 [shape = 's32[1]{0}', space=sflag, size = 0x4, scoped, tag = 'scoped memory for tpu_custom_call.1']
    %13 = vsyncpa [#allocation5], 0
    // Predicated region
    $region2: #{tpu_custom_call.1} parent=1 // pred_check
      _
    $region3: #{tpu_custom_call.1} parent=1 // pred_check_branch
      %15 = sbr.rel (0) target = $region5
    $region4: #{tpu_custom_call.1} parent=1 // pred_region
      _
    $region5: #{tpu_custom_call.1} parent=1 // pred_fallthru
      _
    // Predicated region
    $region6: #{tpu_custom_call.1} parent=1 // pred_check
      _
    $region7: #{tpu_custom_call.1} parent=1 // pred_check_branch
      %17 = sbr.rel (0) target = $region9
    $region8: #{tpu_custom_call.1} parent=1 // pred_region
      _
    $region9: #{tpu_custom_call.1} parent=1 // pred_fallthru
      _
    // Predicated region
    $region10: #{tpu_custom_call.1} parent=1 // pred_check
      _
    $region11: #{tpu_custom_call.1} parent=1 // pred_check_branch
      %19 = sbr.rel (0) target = $region13
    $region12: #{tpu_custom_call.1} parent=1 // pred_region
      _
    $region13: #{tpu_custom_call.1} parent=1 // pred_fallthru
      _
    // Predicated region
    $region14: #{tpu_custom_call.1} parent=1 // pred_check
      _
    $region15: #{tpu_custom_call.1} parent=1 // pred_check_branch
      %21 = sbr.rel (0) target = $region17
    $region16: #{tpu_custom_call.1} parent=1 // pred_region
      _
    $region17: #{tpu_custom_call.1} parent=1 // pred_fallthru
      _
    // Predicated region
    $region18: #{tpu_custom_call.1} parent=1 // pred_check
      _
    $region19: #{tpu_custom_call.1} parent=1 // pred_check_branch
      %23 = sbr.rel (0) target = $region21
    $region20: #{tpu_custom_call.1} parent=1 // pred_region
      _
    $region21: #{tpu_custom_call.1} parent=1 // pred_fallthru
      _
    // Predicated region
    $region22: #{tpu_custom_call.1} parent=1 // pred_check
      _
    $region23: #{tpu_custom_call.1} parent=1 // pred_check_branch
      %25 = sbr.rel (0) target = $region25
    $region24: #{tpu_custom_call.1} parent=1 // pred_region
      _
    $region25: #{tpu_custom_call.1} parent=1 // pred_fallthru
      _
    // Predicated region
    $region26: #{tpu_custom_call.1} parent=1 // pred_check
      _
    $region27: #{tpu_custom_call.1} parent=1 // pred_check_branch
      %27 = sbr.rel (0) target = $region29
    $region28: #{tpu_custom_call.1} parent=1 // pred_region
      _
    $region29: #{tpu_custom_call.1} parent=1 // pred_fallthru
      _
    %p28 = scmp.eq.s32.totalorder 0, 0
    // Predicated region
    $region30: #{tpu_custom_call.1} parent=1 // pred_check
      %p29 = pneg %p28
    $region31: #{tpu_custom_call.1} parent=1 // pred_check_branch
      %31 = sbr.rel (%p29) target = $region33
    $region32: #{tpu_custom_call.1} parent=1 // pred_region
      %vm32 = vcmask 254976
      %33 = vst.msk [vmem:[#allocation2] sm:$0x3] %vm32, 0.0
    $region33: #{tpu_custom_call.1} parent=1 // pred_fallthru
      _
    %v34 = vld [vmem:[%s0] sm:$0xff]
    %v35 = vld [vmem:[%s0 + $0x8] sm:$0xff]
    %v36 = vld [vmem:[#allocation2] sm:$0x3]
    %vm37 = vcmask 261120
    %v38 = vsel %vm37, %v34, 0.0
    %v39 = vrot.slane %v38, 4
    %v40 = vadd.f32 %v38, %v39
    %v41 = vrot.slane %v40, 2
    %v42 = vadd.f32 %v40, %v41
    %v43 = vrot.slane %v42, 1
    %v44 = vadd.f32 %v42, %v43
    %v45 = vsel %vm37, %v35, 0.0
    %v46 = vrot.slane %v45, 4
    %v47 = vadd.f32 %v45, %v46
    %v48 = vrot.slane %v47, 2
    %v49 = vadd.f32 %v47, %v48
    %v50 = vrot.slane %v49, 1
    %v51 = vadd.f32 %v49, %v50
    %vm54 = vcmask 1041409
    %v55 = vsel %vm54, %v51, %v44
    %v57 = vadd.f32 %v36, %v55
    %vm58 = vcmask 254976
    %59 = vst.msk [vmem:[#allocation2] sm:$0x3] %vm58, %v57
    // Predicated region
    $region34: #{tpu_custom_call.1} parent=1 // pred_check
      %p60 = pneg %p28
    $region35: #{tpu_custom_call.1} parent=1 // pred_check_branch
      %62 = sbr.rel (%p60) target = $region37
    $region36: #{tpu_custom_call.1} parent=1 // pred_region
      %v63 = vld [vmem:[#allocation2] sm:$0x3]
      %v64 = vmul.f32 %v63, 0.125
      %v65 = vld [vmem:[%s1] sm:$0xff]
      %v66 = vld [vmem:[%s1 + $0x8] sm:$0xff]
      %v67 = vld [vmem:[%s1 + $0x10] sm:$0xff]
      %v68 = vld [vmem:[%s1 + $0x18] sm:$0xff]
      %v69 = vld [vmem:[%s2] sm:$0x1]
      %v71 = vlaneseq
      %v72 = vshrl.u32 %v71, 7
      %v73 = vsub.s32 0, %v72
      %v74 = vrot.slane %v69, %v73
      %v77 = vsel %vm37, %v64, 0
      %79 = vmatprep.subr.mxu0 0.0
      %80 = vmatpush1.msra.mxu0 %v65
      %81 = vmatprep.subr.mxu0 0.0
      %82 = vmatpush1.msra.mxu0 %v66
      %83 = vmatprep.subr.mxu0 0.0
      %84 = vmatpush1.msra.mxu0 %v67
      %85 = vmatprep.subr.mxu0 0.0
      %86 = vmatpush1.msra.mxu0 %v68
      %87 = vmatprep.subr.mxu0 0.0
      %88 = vmatpush1.msra.mxu0 0.0
      %89 = vmatprep.subr.mxu0 0.0
      %90 = vmatpush1.msra.mxu0 0.0
      %91 = vmatprep.subr.mxu0 0.0
      %92 = vmatpush1.msra.mxu0 0.0
      %93 = vmatprep.subr.mxu0 0.0
      %94 = vmatpush1.msra.mxu0 0.0
      %95 = vmatprep.subr.mxu0 0.0
      %96 = vmatpush1.msra.mxu0 0.0
      %97 = vmatprep.subr.mxu0 0.0
      %98 = vmatpush1.msra.mxu0 0.0
      %99 = vmatprep.subr.mxu0 0.0
      %100 = vmatpush1.msra.mxu0 0.0
      %101 = vmatprep.subr.mxu0 0.0
      %102 = vmatpush1.msra.mxu0 0.0
      %103 = vmatprep.subr.mxu0 0.0
      %104 = vmatpush1.msra.mxu0 0.0
      %105 = vmatprep.subr.mxu0 0.0
      %106 = vmatpush1.msra.mxu0 0.0
      %107 = vmatprep.subr.mxu0 0.0
      %108 = vmatpush1.msra.mxu0 0.0
      %109 = vmatprep.subr.mxu0 0.0
      %110 = vmatpush1.msra.mxu0 0.0
      %111 = vmatprep.subr.mxu0 0.0
      %112 = vmatpush1.msra.mxu0 0.0
      %113 = vmatprep.subr.mxu0 0.0
      %114 = vmatpush1.msra.mxu0 0.0
      %115 = vmatprep.subr.mxu0 0.0
      %116 = vmatpush1.msra.mxu0 0.0
      %117 = vmatprep.subr.mxu0 0.0
      %118 = vmatpush1.msra.mxu0 0.0
      %119 = vmatprep.subr.mxu0 0.0
      %120 = vmatpush1.msra.mxu0 0.0
      %121 = vmatprep.subr.mxu0 0.0
      %122 = vmatpush1.msra.mxu0 0.0
      %123 = vmatprep.subr.mxu0 0.0
      %124 = vmatpush1.msra.mxu0 0.0
      %125 = vmatprep.subr.mxu0 0.0
      %126 = vmatpush1.msra.mxu0 0.0
      %127 = vmatprep.subr.mxu0 0.0
      %128 = vmatpush1.msra.mxu0 0.0
      %129 = vmatprep.subr.mxu0 0.0
      %130 = vmatpush1.msra.mxu0 0.0
      %131 = vmatprep.subr.mxu0 0.0
      %132 = vmatpush1.msra.mxu0 0.0
      %133 = vmatprep.subr.mxu0 0.0
      %134 = vmatpush1.msra.mxu0 0.0
      %135 = vmatprep.subr.mxu0 0.0
      %136 = vmatpush1.msra.mxu0 0.0
      %137 = vmatprep.subr.mxu0 0.0
      %138 = vmatpush1.msra.mxu0 0.0
      %139 = vmatprep.subr.mxu0 0.0
      %140 = vmatpush1.msra.mxu0 0.0
      %141 = vmatprep.subr.mxu0 0.0
      %142 = vmatpush1.msra.mxu0 0.0
      %143 = vmatprep.mubr.f32.mxu0 0.0
      %144 = vmatmul.mubr.f32.gmra.mrb[0].mxu0 %v77
      %v145 = vpop.f32.mrb[0].mxu0
      %v146 = vadd.f32 %v74, %v145
      %v147 = vpop.f32.mrb[0].mxu0
      %148 = vdwg.mxu0
      %v149 = vlaneseq
      %v150 = vand.u32 %v149, 127
      %vm151 = vcmp.eq.s32.totalorder %v150, 16
      %v152 = vsel %vm151, %v146, 0.0
      %vm153 = vcmask 132096
      %v154 = vsel %vm153, %v152, 0.0
      %155 = vadd.xlane.f32.xlu0 %v154
      %v156 = vpop.xlane.xlu0 %155
      %v157 = vmax.f32 %v146, 0.0
      %v158 = vld [vmem:[%s3] sm:$0xff]
      %v159 = vld [vmem:[%s3 + $0x8] sm:$0xff]
      %v160 = vld [vmem:[%s3 + $0x10] sm:$0x1]
      %v161 = vld [vmem:[%s4] sm:$0x1]
      %v163 = vlaneseq
      %v164 = vshrl.u32 %v163, 7
      %v165 = vsub.s32 0, %v164
      %v166 = vrot.slane %v161, %v165
      %vm168 = vcmask 138240
      %v170 = vsel %vm168, %v157, 0
      %vm172 = vcmask 1040384
      %v174 = vsel %vm172, %v160, 0
      %176 = vmatprep.subr.mxu0 0.0
      %177 = vmatpush1.msra.mxu0 %v158
      %178 = vmatprep.subr.mxu0 0.0
      %179 = vmatpush1.msra.mxu0 %v159
      %180 = vmatprep.subr.mxu0 0.0
      %181 = vmatpush1.msra.mxu0 %v174
      %182 = vmatprep.subr.mxu0 0.0
      %183 = vmatpush1.msra.mxu0 0.0
      %184 = vmatprep.subr.mxu0 0.0
      %185 = vmatpush1.msra.mxu0 0.0
      %186 = vmatprep.subr.mxu0 0.0
      %187 = vmatpush1.msra.mxu0 0.0
      %188 = vmatprep.subr.mxu0 0.0
      %189 = vmatpush1.msra.mxu0 0.0
      %190 = vmatprep.subr.mxu0 0.0
      %191 = vmatpush1.msra.mxu0 0.0
      %192 = vmatprep.subr.mxu0 0.0
      %193 = vmatpush1.msra.mxu0 0.0
      %194 = vmatprep.subr.mxu0 0.0
      %195 = vmatpush1.msra.mxu0 0.0
      %196 = vmatprep.subr.mxu0 0.0
      %197 = vmatpush1.msra.mxu0 0.0
      %198 = vmatprep.subr.mxu0 0.0
      %199 = vmatpush1.msra.mxu0 0.0
      %200 = vmatprep.subr.mxu0 0.0
      %201 = vmatpush1.msra.mxu0 0.0
      %202 = vmatprep.subr.mxu0 0.0
      %203 = vmatpush1.msra.mxu0 0.0
      %204 = vmatprep.subr.mxu0 0.0
      %205 = vmatpush1.msra.mxu0 0.0
      %206 = vmatprep.subr.mxu0 0.0
      %207 = vmatpush1.msra.mxu0 0.0
      %208 = vmatprep.subr.mxu0 0.0
      %209 = vmatpush1.msra.mxu0 0.0
      %210 = vmatprep.subr.mxu0 0.0
      %211 = vmatpush1.msra.mxu0 0.0
      %212 = vmatprep.subr.mxu0 0.0
      %213 = vmatpush1.msra.mxu0 0.0
      %214 = vmatprep.subr.mxu0 0.0
      %215 = vmatpush1.msra.mxu0 0.0
      %216 = vmatprep.subr.mxu0 0.0
      %217 = vmatpush1.msra.mxu0 0.0
      %218 = vmatprep.subr.mxu0 0.0
      %219 = vmatpush1.msra.mxu0 0.0
      %220 = vmatprep.subr.mxu0 0.0
      %221 = vmatpush1.msra.mxu0 0.0
      %222 = vmatprep.subr.mxu0 0.0
      %223 = vmatpush1.msra.mxu0 0.0
      %224 = vmatprep.subr.mxu0 0.0
      %225 = vmatpush1.msra.mxu0 0.0
      %226 = vmatprep.subr.mxu0 0.0
      %227 = vmatpush1.msra.mxu0 0.0
      %228 = vmatprep.subr.mxu0 0.0
      %229 = vmatpush1.msra.mxu0 0.0
      %230 = vmatprep.subr.mxu0 0.0
      %231 = vmatpush1.msra.mxu0 0.0
      %232 = vmatprep.subr.mxu0 0.0
      %233 = vmatpush1.msra.mxu0 0.0
      %234 = vmatprep.subr.mxu0 0.0
      %235 = vmatpush1.msra.mxu0 0.0
      %236 = vmatprep.subr.mxu0 0.0
      %237 = vmatpush1.msra.mxu0 0.0
      %238 = vmatprep.subr.mxu0 0.0
      %239 = vmatpush1.msra.mxu0 0.0
      %240 = vmatprep.mubr.f32.mxu0 0.0
      %241 = vmatmul.mubr.f32.gmra.mrb[0].mxu0 %v170
      %v242 = vpop.f32.mrb[0].mxu0
      %v243 = vadd.f32 %v166, %v242
      %v244 = vpop.f32.mrb[0].mxu0
      %245 = vdwg.mxu0
      %s246 = sld [smem:[#allocation3]]
      %v247 = vstv %s246
      %v248 = vrcp.pop %v247
      %v249 = vmul.f32 %v243, %v248
      %vm250 = vcmp.lt.s32.totalorder %v150, 3
      %v251 = vsel %vm250, %v249, -inf
      %vm252 = vcmask 58368
      %v253 = vsel %vm252, %v251, -inf
      %254 = vmax.xlane.f32.xlu0 %v253
      %v255 = vpop.xlane.xlu0 %254
      %v256 = vsub.f32 %v251, %v255
      %v257 = vmul.f32 %v256, 1.442695
      %v258 = vpow.pop %v257
      %v259 = vsel %vm252, %v258, 0.0
      %260 = vadd.xlane.f32.xlu0 %v259
      %v261 = vpop.xlane.xlu0 %260
      %v262 = vlog2.pop %v261
      %v263 = vmul.f32 %v262, 0.6931472
      %v264 = vadd.f32 %v255, %v263
      %v265 = vld [vmem:[%s6] sm:$0x3]
      %266 = vset.pattern.permute.xlu0 0
      %267 = vperm.xlu0 %266, %v265
      %v268 = vpop.permute.xlu0 %267
      %vm269 = vcmp.eq.s32.totalorder %v268, %v150
      %v270 = vsel %vm269, %v249, 0.0
      %v271 = vsel %vm252, %v270, 0.0
      %272 = vadd.xlane.f32.xlu0 %v271
      %v273 = vpop.xlane.xlu0 %272
      %v274 = vsub.f32 %v264, %v273
      %vm275 = vcmp.eq.s32.totalorder %v150, 3
      %v276 = vsel %vm275, %v156, 0.0
      %v277 = vadd.f32 %v249, %v276
      %vm278 = vcmp.eq.s32.totalorder %v150, 4
      %v279 = vsel %vm278, %v274, 0.0
      %v280 = vadd.f32 %v277, %v279
      %281 = vst.msk [vmem:[#allocation4] sm:$0x3] %vm252, %v280
    $region37: #{tpu_custom_call.1} parent=1 // pred_fallthru
      _
    // Predicated region
    $region38: #{tpu_custom_call.1} parent=1 // pred_check
      _
    $region39: #{tpu_custom_call.1} parent=1 // pred_check_branch
      %283 = sbr.rel (0) target = $region41
    $region40: #{tpu_custom_call.1} parent=1 // pred_region
      %s285 = ssub.s32 32, 32
      %286 = vsyncadd [#allocation5], %s285
      %s288 = sshll.u32 [#allocation4], 4
      %s289 = int_to_ptr.vmem [resolvable:$true] %s288
      %291 = dma.vmem_to_hbm [thread:$0]  %s289, 32, %s7, [#allocation5]
    $region41: #{tpu_custom_call.1} parent=1 // pred_fallthru
      _
    // Predicated region
    $region42: #{tpu_custom_call.1} parent=1 // pred_check
      _
    $region43: #{tpu_custom_call.1} parent=1 // pred_check_branch
      %293 = sbr.rel (0) target = $region45
    $region44: #{tpu_custom_call.1} parent=1 // pred_region
      %294 = dma.done [#allocation5], 32
    $region45: #{tpu_custom_call.1} parent=1 // pred_fallthru
      _
    %295 = vsyncpa [#allocation5], 1

// kernel: tpu_custom_call.1
$region0: #{tpu_custom_call.1}
  #allocation0 [shape = 'u32[]', space=smem, size = 0x4, offset = 0x4, fixed_abs, tag = 'smem constant byte address 0x4 - core index']
  #allocation1 [shape = 'u32[144,128]{1,0:T(1,128)}', space=vmem, size = 0x12000, scoped, tag = 'internal scratch']
  #allocation2 [shape = 'f32[2,32]{1,0:T(2,128)}', space=vmem, size = 0x400, scoped, tag = 'scratch operand']
  #allocation3 [shape = 'f32[1]{0:T(128)S(6)}', space=smem, size = 0x200, scoped, tag = 'scoped memory for tpu_custom_call.1']
  %s0 = inlined_call_operand.vmem [shape: f32[2,8,32], index: 0, kind: input, shape index: {}]
  %s1 = inlined_call_operand.vmem [shape: f32[32,17], index: 1, kind: input, shape index: {}]
  %s2 = inlined_call_operand.vmem [shape: f32[1,17], index: 2, kind: input, shape index: {}]
  %s3 = inlined_call_operand.vmem [shape: f32[17,8], index: 3, kind: input, shape index: {}]
  %s4 = inlined_call_operand.vmem [shape: f32[1,8], index: 4, kind: input, shape index: {}]
  %s5 = inlined_call_operand.<no memory space> [shape: f32[1], index: 5, kind: input, shape index: {}]
  %s6 = inlined_call_operand.vmem [shape: s32[2,1], index: 6, kind: input, shape index: {}]
  %s7 = inlined_call_operand.hbm [shape: f32[2,8], index: 7, kind: output, shape index: {}]
  %s8 = sld [smem:[#allocation0]]
  $region46: #{tpu_custom_call.1} parent=0
    _
  %s10 = ssub.s32 1, %s8
  %s11 = scalar_select 0, %s10, %s8
  %12 = sst [smem:[#allocation3]] %s5
  $region1: #{tpu_custom_call.1} parent=0
    #allocation4 [shape = 'u8[1024]{0}', space=vmem, size = 0x400, scoped, tag = 'output window, operand 0, single buffered']
    #allocation5 [shape = 's32[1]{0}', space=sflag, size = 0x4, scoped, tag = 'scoped memory for tpu_custom_call.1']
    %13 = vsyncpa [#allocation5], 0
    // Predicated region
    $region2: #{tpu_custom_call.1} parent=1 // pred_check
      _
    $region3: #{tpu_custom_call.1} parent=1 // pred_check_branch
      %15 = sbr.rel (0) target = $region5
    $region4: #{tpu_custom_call.1} parent=1 // pred_region
      _
    $region5: #{tpu_custom_call.1} parent=1 // pred_fallthru
      _
    // Predicated region
    $region6: #{tpu_custom_call.1} parent=1 // pred_check
      _
    $region7: #{tpu_custom_call.1} parent=1 // pred_check_branch
      %17 = sbr.rel (0) target = $region9
    $region8: #{tpu_custom_call.1} parent=1 // pred_region
      _
    $region9: #{tpu_custom_call.1} parent=1 // pred_fallthru
      _
    // Predicated region
    $region10: #{tpu_custom_call.1} parent=1 // pred_check
      _
    $region11: #{tpu_custom_call.1} parent=1 // pred_check_branch
      %19 = sbr.rel (0) target = $region13
    $region12: #{tpu_custom_call.1} parent=1 // pred_region
      _
    $region13: #{tpu_custom_call.1} parent=1 // pred_fallthru
      _
    // Predicated region
    $region14: #{tpu_custom_call.1} parent=1 // pred_check
      _
    $region15: #{tpu_custom_call.1} parent=1 // pred_check_branch
      %21 = sbr.rel (0) target = $region17
    $region16: #{tpu_custom_call.1} parent=1 // pred_region
      _
    $region17: #{tpu_custom_call.1} parent=1 // pred_fallthru
      _
    // Predicated region
    $region18: #{tpu_custom_call.1} parent=1 // pred_check
      _
    $region19: #{tpu_custom_call.1} parent=1 // pred_check_branch
      %23 = sbr.rel (0) target = $region21
    $region20: #{tpu_custom_call.1} parent=1 // pred_region
      _
    $region21: #{tpu_custom_call.1} parent=1 // pred_fallthru
      _
    // Predicated region
    $region22: #{tpu_custom_call.1} parent=1 // pred_check
      _
    $region23: #{tpu_custom_call.1} parent=1 // pred_check_branch
      %25 = sbr.rel (0) target = $region25
    $region24: #{tpu_custom_call.1} parent=1 // pred_region
      _
    $region25: #{tpu_custom_call.1} parent=1 // pred_fallthru
      _
    // Predicated region
    $region26: #{tpu_custom_call.1} parent=1 // pred_check
      _
    $region27: #{tpu_custom_call.1} parent=1 // pred_check_branch
      %27 = sbr.rel (0) target = $region29
    $region28: #{tpu_custom_call.1} parent=1 // pred_region
      _
    $region29: #{tpu_custom_call.1} parent=1 // pred_fallthru
      _
    %p28 = scmp.eq.s32.totalorder 0, 0
    // Predicated region
    $region30: #{tpu_custom_call.1} parent=1 // pred_check
      %p29 = pneg %p28
    $region31: #{tpu_custom_call.1} parent=1 // pred_check_branch
      %31 = sbr.rel (%p29) target = $region33
    $region32: #{tpu_custom_call.1} parent=1 // pred_region
      %vm32 = vcmask 254976
      %33 = vst.msk [vmem:[#allocation2] sm:$0x3] %vm32, 0.0
    $region33: #{tpu_custom_call.1} parent=1 // pred_fallthru
      _
    %v34 = vld [vmem:[%s0] sm:$0xff]
    %v35 = vld [vmem:[%s0 + $0x8] sm:$0xff]
    %v36 = vld [vmem:[#allocation2] sm:$0x3]
    %vm37 = vcmask 261120
    %v38 = vsel %vm37, %v34, 0.0
    %v39 = vrot.slane %v38, 4
    %v40 = vadd.f32 %v38, %v39
    %v41 = vrot.slane %v40, 2
    %v42 = vadd.f32 %v40, %v41
    %v43 = vrot.slane %v42, 1
    %v44 = vadd.f32 %v42, %v43
    %v45 = vsel %vm37, %v35, 0.0
    %v46 = vrot.slane %v45, 4
    %v47 = vadd.f32 %v45, %v46
    %v48 = vrot.slane %v47, 2
    %v49 = vadd.f32 %v47, %v48
    %v50 = vrot.slane %v49, 1
    %v51 = vadd.f32 %v49, %v50
    %vm54 = vcmask 1041409
    %v55 = vsel %vm54, %v51, %v44
    %v57 = vadd.f32 %v36, %v55
    %vm58 = vcmask 254976
    %59 = vst.msk [vmem:[#allocation2] sm:$0x3] %vm58, %v57
    // Predicated region
    $region34: #{tpu_custom_call.1} parent=1 // pred_check
      %p60 = pneg %p28
    $region35: #{tpu_custom_call.1} parent=1 // pred_check_branch
      %62 = sbr.rel (%p60) target = $region37
    $region36: #{tpu_custom_call.1} parent=1 // pred_region
      %v63 = vld [vmem:[#allocation2] sm:$0x3]
      %v64 = vmul.f32 %v63, 0.125
      %v65 = vld [vmem:[%s1] sm:$0xff]
      %v66 = vld [vmem:[%s1 + $0x8] sm:$0xff]
      %v67 = vld [vmem:[%s1 + $0x10] sm:$0xff]
      %v68 = vld [vmem:[%s1 + $0x18] sm:$0xff]
      %v69 = vld [vmem:[%s2] sm:$0x1]
      %v71 = vlaneseq
      %v72 = vshrl.u32 %v71, 7
      %v73 = vsub.s32 0, %v72
      %v74 = vrot.slane %v69, %v73
      %v77 = vsel %vm37, %v64, 0
      %79 = vmatprep.subr.mxu0 0.0
      %80 = vmatpush1.msra.mxu0 %v65
      %81 = vmatprep.subr.mxu0 0.0
      %82 = vmatpush1.msra.mxu0 %v66
      %83 = vmatprep.subr.mxu0 0.0
      %84 = vmatpush1.msra.mxu0 %v67
      %85 = vmatprep.subr.mxu0 0.0
      %86 = vmatpush1.msra.mxu0 %v68
      %87 = vmatprep.subr.mxu0 0.0
      %88 = vmatpush1.msra.mxu0 0.0
      %89 = vmatprep.subr.mxu0 0.0
      %90 = vmatpush1.msra.mxu0 0.0
      %91 = vmatprep.subr.mxu0 0.0
      %92 = vmatpush1.msra.mxu0 0.0
      %93 = vmatprep.subr.mxu0 0.0
      %94 = vmatpush1.msra.mxu0 0.0
      %95 = vmatprep.subr.mxu0 0.0
      %96 = vmatpush1.msra.mxu0 0.0
      %97 = vmatprep.subr.mxu0 0.0
      %98 = vmatpush1.msra.mxu0 0.0
      %99 = vmatprep.subr.mxu0 0.0
      %100 = vmatpush1.msra.mxu0 0.0
      %101 = vmatprep.subr.mxu0 0.0
      %102 = vmatpush1.msra.mxu0 0.0
      %103 = vmatprep.subr.mxu0 0.0
      %104 = vmatpush1.msra.mxu0 0.0
      %105 = vmatprep.subr.mxu0 0.0
      %106 = vmatpush1.msra.mxu0 0.0
      %107 = vmatprep.subr.mxu0 0.0
      %108 = vmatpush1.msra.mxu0 0.0
      %109 = vmatprep.subr.mxu0 0.0
      %110 = vmatpush1.msra.mxu0 0.0
      %111 = vmatprep.subr.mxu0 0.0
      %112 = vmatpush1.msra.mxu0 0.0
      %113 = vmatprep.subr.mxu0 0.0
      %114 = vmatpush1.msra.mxu0 0.0
      %115 = vmatprep.subr.mxu0 0.0
      %116 = vmatpush1.msra.mxu0 0.0
      %117 = vmatprep.subr.mxu0 0.0
      %118 = vmatpush1.msra.mxu0 0.0
      %119 = vmatprep.subr.mxu0 0.0
      %120 = vmatpush1.msra.mxu0 0.0
      %121 = vmatprep.subr.mxu0 0.0
      %122 = vmatpush1.msra.mxu0 0.0
      %123 = vmatprep.subr.mxu0 0.0
      %124 = vmatpush1.msra.mxu0 0.0
      %125 = vmatprep.subr.mxu0 0.0
      %126 = vmatpush1.msra.mxu0 0.0
      %127 = vmatprep.subr.mxu0 0.0
      %128 = vmatpush1.msra.mxu0 0.0
      %129 = vmatprep.subr.mxu0 0.0
      %130 = vmatpush1.msra.mxu0 0.0
      %131 = vmatprep.subr.mxu0 0.0
      %132 = vmatpush1.msra.mxu0 0.0
      %133 = vmatprep.subr.mxu0 0.0
      %134 = vmatpush1.msra.mxu0 0.0
      %135 = vmatprep.subr.mxu0 0.0
      %136 = vmatpush1.msra.mxu0 0.0
      %137 = vmatprep.subr.mxu0 0.0
      %138 = vmatpush1.msra.mxu0 0.0
      %139 = vmatprep.subr.mxu0 0.0
      %140 = vmatpush1.msra.mxu0 0.0
      %141 = vmatprep.subr.mxu0 0.0
      %142 = vmatpush1.msra.mxu0 0.0
      %143 = vmatprep.mubr.f32.mxu0 0.0
      %144 = vmatmul.mubr.f32.gmra.mrb[0].mxu0 %v77
      %v145 = vpop.f32.mrb[0].mxu0
      %v146 = vadd.f32 %v74, %v145
      %v147 = vpop.f32.mrb[0].mxu0
      %148 = vdwg.mxu0
      %v149 = vlaneseq
      %v150 = vand.u32 %v149, 127
      %vm151 = vcmp.eq.s32.totalorder %v150, 16
      %v152 = vsel %vm151, %v146, 0.0
      %vm153 = vcmask 132096
      %v154 = vsel %vm153, %v152, 0.0
      %155 = vadd.xlane.f32.xlu0 %v154
      %v156 = vpop.xlane.xlu0 %155
      %v157 = vmax.f32 %v146, 0.0
      %v158 = vld [vmem:[%s3] sm:$0xff]
      %v159 = vld [vmem:[%s3 + $0x8] sm:$0xff]
      %v160 = vld [vmem:[%s3 + $0x10] sm:$0x1]
      %v161 = vld [vmem:[%s4] sm:$0x1]
      %v163 = vlaneseq
      %v164 = vshrl.u32 %v163, 7
      %v165 = vsub.s32 0, %v164
      %v166 = vrot.slane %v161, %v165
      %vm168 = vcmask 138240
      %v170 = vsel %vm168, %v157, 0
      %vm172 = vcmask 1040384
      %v174 = vsel %vm172, %v160, 0
      %176 = vmatprep.subr.mxu0 0.0
      %177 = vmatpush1.msra.mxu0 %v158
      %178 = vmatprep.subr.mxu0 0.0
      %179 = vmatpush1.msra.mxu0 %v159
      %180 = vmatprep.subr.mxu0 0.0
      %181 = vmatpush1.msra.mxu0 %v174
      %182 = vmatprep.subr.mxu0 0.0
      %183 = vmatpush1.msra.mxu0 0.0
      %184 = vmatprep.subr.mxu0 0.0
      %185 = vmatpush1.msra.mxu0 0.0
      %186 = vmatprep.subr.mxu0 0.0
      %187 = vmatpush1.msra.mxu0 0.0
      %188 = vmatprep.subr.mxu0 0.0
      %189 = vmatpush1.msra.mxu0 0.0
      %190 = vmatprep.subr.mxu0 0.0
      %191 = vmatpush1.msra.mxu0 0.0
      %192 = vmatprep.subr.mxu0 0.0
      %193 = vmatpush1.msra.mxu0 0.0
      %194 = vmatprep.subr.mxu0 0.0
      %195 = vmatpush1.msra.mxu0 0.0
      %196 = vmatprep.subr.mxu0 0.0
      %197 = vmatpush1.msra.mxu0 0.0
      %198 = vmatprep.subr.mxu0 0.0
      %199 = vmatpush1.msra.mxu0 0.0
      %200 = vmatprep.subr.mxu0 0.0
      %201 = vmatpush1.msra.mxu0 0.0
      %202 = vmatprep.subr.mxu0 0.0
      %203 = vmatpush1.msra.mxu0 0.0
      %204 = vmatprep.subr.mxu0 0.0
      %205 = vmatpush1.msra.mxu0 0.0
      %206 = vmatprep.subr.mxu0 0.0
      %207 = vmatpush1.msra.mxu0 0.0
      %208 = vmatprep.subr.mxu0 0.0
      %209 = vmatpush1.msra.mxu0 0.0
      %210 = vmatprep.subr.mxu0 0.0
      %211 = vmatpush1.msra.mxu0 0.0
      %212 = vmatprep.subr.mxu0 0.0
      %213 = vmatpush1.msra.mxu0 0.0
      %214 = vmatprep.subr.mxu0 0.0
      %215 = vmatpush1.msra.mxu0 0.0
      %216 = vmatprep.subr.mxu0 0.0
      %217 = vmatpush1.msra.mxu0 0.0
      %218 = vmatprep.subr.mxu0 0.0
      %219 = vmatpush1.msra.mxu0 0.0
      %220 = vmatprep.subr.mxu0 0.0
      %221 = vmatpush1.msra.mxu0 0.0
      %222 = vmatprep.subr.mxu0 0.0
      %223 = vmatpush1.msra.mxu0 0.0
      %224 = vmatprep.subr.mxu0 0.0
      %225 = vmatpush1.msra.mxu0 0.0
      %226 = vmatprep.subr.mxu0 0.0
      %227 = vmatpush1.msra.mxu0 0.0
      %228 = vmatprep.subr.mxu0 0.0
      %229 = vmatpush1.msra.mxu0 0.0
      %230 = vmatprep.subr.mxu0 0.0
      %231 = vmatpush1.msra.mxu0 0.0
      %232 = vmatprep.subr.mxu0 0.0
      %233 = vmatpush1.msra.mxu0 0.0
      %234 = vmatprep.subr.mxu0 0.0
      %235 = vmatpush1.msra.mxu0 0.0
      %236 = vmatprep.subr.mxu0 0.0
      %237 = vmatpush1.msra.mxu0 0.0
      %238 = vmatprep.subr.mxu0 0.0
      %239 = vmatpush1.msra.mxu0 0.0
      %240 = vmatprep.mubr.f32.mxu0 0.0
      %241 = vmatmul.mubr.f32.gmra.mrb[0].mxu0 %v170
      %v242 = vpop.f32.mrb[0].mxu0
      %v243 = vadd.f32 %v166, %v242
      %v244 = vpop.f32.mrb[0].mxu0
      %245 = vdwg.mxu0
      %s246 = sld [smem:[#allocation3]]
      %v247 = vstv %s246
      %v248 = vrcp.pop %v247
      %v249 = vmul.f32 %v243, %v248
      %vm250 = vcmp.lt.s32.totalorder %v150, 3
      %v251 = vsel %vm250, %v249, -inf
      %vm252 = vcmask 58368
      %v253 = vsel %vm252, %v251, -inf
      %254 = vmax.xlane.f32.xlu0 %v253
      %v255 = vpop.xlane.xlu0 %254
      %v256 = vsub.f32 %v251, %v255
      %v257 = vmul.f32 %v256, 1.442695
      %v258 = vpow.pop %v257
      %v259 = vsel %vm252, %v258, 0.0
      %260 = vadd.xlane.f32.xlu0 %v259
      %v261 = vpop.xlane.xlu0 %260
      %v262 = vlog2.pop %v261
      %v263 = vmul.f32 %v262, 0.6931472
      %v264 = vadd.f32 %v255, %v263
      %v265 = vld [vmem:[%s6] sm:$0x3]
      %266 = vset.pattern.permute.xlu0 0
      %267 = vperm.xlu0 %266, %v265
      %v268 = vpop.permute.xlu0 %267
      %vm269 = vcmp.eq.s32.totalorder %v268, %v150
      %v270 = vsel %vm269, %v249, 0.0
      %v271 = vsel %vm252, %v270, 0.0
      %272 = vadd.xlane.f32.xlu0 %v271
      %v273 = vpop.xlane.xlu0 %272
      %v274 = vsub.f32 %v264, %v273
      %vm275 = vcmp.eq.s32.totalorder %v150, 3
      %v276 = vsel %vm275, %v156, 0.0
      %v277 = vadd.f32 %v249, %v276
      %vm278 = vcmp.eq.s32.totalorder %v150, 4
      %v279 = vsel %vm278, %v274, 0.0
      %v280 = vadd.f32 %v277, %v279
      %281 = vst.msk [vmem:[#allocation4] sm:$0x3] %vm252, %v280
    $region37: #{tpu_custom_call.1} parent=1 // pred_fallthru
      _
    // Predicated region
    $region38: #{tpu_custom_call.1} parent=1 // pred_check
      _
    $region39: #{tpu_custom_call.1} parent=1 // pred_check_branch
      %283 = sbr.rel (0) target = $region41
    $region40: #{tpu_custom_call.1} parent=1 // pred_region
      %s285 = ssub.s32 32, 32
      %286 = vsyncadd [#allocation5], %s285
      %s288 = sshll.u32 [#allocation4], 4
      %s289 = int_to_ptr.vmem [resolvable:$true] %s288
      %291 = dma.vmem_to_hbm [thread:$0]  %s289, 32, %s7, [#allocation5]
    $region41: #{tpu_custom_call.1} parent=1 // pred_fallthru
      _
    // Predicated region
    $region42: #{tpu_custom_call.1} parent=1 // pred_check
      _
    $region43: #{tpu_custom_call.1} parent=1 // pred_check_branch
      %293 = sbr.rel (0) target = $region45
    $region44: #{tpu_custom_call.1} parent=1 // pred_region
      %294 = dma.done [#allocation5], 32
    $region45: #{tpu_custom_call.1} parent=1 // pred_fallthru
      _
    %295 = vsyncpa [#allocation5], 1

</llo_original>
